<compile_context>
chip_gen: v7x
topology: tpu7x:2x2x1
jax: 0.10.0
libtpu: 0.0.40
codegen_flags: <defaults>
</compile_context>

<pallas_src>
import jax
import jax.numpy as jnp
from jax.experimental import pallas as pl
from jax.experimental.pallas import tpu as pltpu


# ---------------------------------------------------------------------------
# Kernel 1: attention weights v   (AvgPool over time -> fc1 -> tanh -> fc2 ->
# softmax over channels).  One grid step per batch element; pure VPU/XLU work,
# the tiny fc layers stay off the MXU.
# ---------------------------------------------------------------------------
def _cwa_v_kernel(x_ref, w1t_ref, b1_ref, w2_ref, b2_ref, v_ref):
    x = x_ref[0].astype(jnp.float32)                               # (C, W)
    # AvgPool2d((1, W)): per-channel mean over time -> (C, 1) column.
    mean_col = jnp.mean(x, axis=1, keepdims=True)
    # fc[0]: Linear(C, r) + Tanh.   w1t = fc1.weight.T : (C, r)
    h_row = jnp.tanh(
        jnp.sum(w1t_ref[...].astype(jnp.float32) * mean_col, axis=0, keepdims=True)
        + b1_ref[...].astype(jnp.float32))                         # (1, r)
    # fc[2]: Linear(r, C).          w2  = fc2.weight   : (C, r)
    s_col = (jnp.sum(w2_ref[...].astype(jnp.float32) * h_row, axis=1, keepdims=True)
             + b2_ref[...].astype(jnp.float32))                    # (C, 1)
    # Softmax over the channel (sublane) axis.
    s_col = s_col - jnp.max(s_col, axis=0, keepdims=True)
    e = jnp.exp(s_col)
    v_ref[0] = (e / jnp.sum(e, axis=0, keepdims=True)).astype(v_ref.dtype)


# ---------------------------------------------------------------------------
# Kernel 2: fm outer product   fm_n[b, c1, c2, t] = x[b, c1, t] * v[b, c2]
# HBM-write-bound; the broadcasted multiply is free filler under the output
# DMA.  Single dense store, time on lanes (last dim), no per-row unroll.
# ---------------------------------------------------------------------------
def _cwa_fm_kernel(x_ref, v_ref, fm_ref):
    x = x_ref[0].astype(jnp.float32)                               # (tc, W)
    v = v_ref[0].astype(jnp.float32)                               # (C, 1)
    # (tc, 1, W) * (1, C, 1) -> (tc, C, W); f32 math in-register, cast at store.
    fm_ref[0] = (x[:, None, :] * v[None, :, :]).astype(fm_ref.dtype)


def _vmem_capacity_bytes():
    """Physical per-core VMEM; conservative (v7x) fallback if the query fails."""
    try:
        cap = getattr(pltpu.get_tpu_info(), "vmem_capacity_bytes", None)
        if cap:
            return int(cap)
    except Exception:
        pass
    return 64 * 1024 * 1024          # v7x per-TensorCore VMEM (smallest part)


def channel_wise_attention_forward(x, fc1_w, fc1_b, fc2_w, fc2_b, *,
                                   fm_dtype=None, vmem_budget_bytes=None):
    """channel_wise_attention forward.

    Args:
      x: (B, C, 1, W) NCHW input (H must be 1, as the torch module requires).
      fc1_w: (r, C), fc1_b: (r,), fc2_w: (C, r), fc2_b: (C,).
      fm_dtype: fm output dtype (default x.dtype). bf16 halves the dominant
        HBM write traffic and the fm VMEM tile.
      vmem_budget_bytes: tile-sizing budget (default 3/4 of the chip's
        per-core VMEM: ~48 MiB on v7x, ~96 MiB on 128 MiB v5e/v6e).

    Returns:
      v    : (B, C)        attention weights (same values as torch).
      fm_n : (B, C, C, W)  kernel-native layout; fm_n[b,c1,c2,t] == torch
             fm[b,c1,t,c2].  No transpose is materialized (perf contract).
    """
    B, C, H, W = x.shape
    if H != 1:
        raise ValueError("torch module only broadcasts correctly for H == 1")
    R = fc1_w.shape[0]
    fm_dtype = jnp.dtype(x.dtype if fm_dtype is None else fm_dtype)

    # Cheap glue next to the B*C*C*W fm write: squeeze H, param layouts.
    xc = x[:, :, 0, :]                         # (B, C, W)
    w1t = fc1_w.T                              # (C, r)
    b1 = fc1_b.reshape(1, R)                   # (1, r)
    w2 = fc2_w                                 # (C, r)
    b2 = fc2_b.reshape(C, 1)                   # (C, 1)

    # --- kernel 1: v, one grid step per batch element -----------------------
    v3 = pl.pallas_call(
        _cwa_v_kernel,
        grid=(B,),
        in_specs=[
            pl.BlockSpec((1, C, W), lambda b: (b, 0, 0)),
            pl.BlockSpec((C, R), lambda b: (0, 0)),    # fc1 weight^T
            pl.BlockSpec((1, R), lambda b: (0, 0)),    # fc1 bias
            pl.BlockSpec((C, R), lambda b: (0, 0)),    # fc2 weight
            pl.BlockSpec((C, 1), lambda b: (0, 0)),    # fc2 bias
        ],
        out_specs=pl.BlockSpec((1, C, 1), lambda b: (b, 0, 0)),
        out_shape=jax.ShapeDtypeStruct((B, C, 1), x.dtype),
        compiler_params=pltpu.CompilerParams(
            dimension_semantics=("parallel",)),
    )(xc, w1t, b1, w2, b2)

    # --- fm tile sizing: actual output itemsize, per-chip VMEM budget -------
    vmem_cap = _vmem_capacity_bytes()
    if vmem_budget_bytes is None:
        vmem_budget_bytes = (vmem_cap * 3) // 4
    fm_item = fm_dtype.itemsize
    x_item = jnp.dtype(x.dtype).itemsize
    # Per c1-row pipeline cost (BlockSpec double-buffers inputs and outputs).
    row_bytes = 2 * W * (C * fm_item + x_item)
    fixed_bytes = 2 * C * x_item + (2 << 20)            # v block + slack
    avail = max(row_bytes, int(vmem_budget_bytes) - fixed_bytes)

    if C * row_bytes <= avail or C <= 8:
        tc = C                                           # full-C tile (no c1 chunking)
    else:
        # c1-chunking: the (1, tc, W) input block needs tc % 8 == 0 (or tc == C);
        # prefer a tc that divides C so no edge blocks are needed.
        tc = max(8, min(C, avail // row_bytes) // 8 * 8)
        for cand in range(tc, 7, -8):
            if C % cand == 0:
                tc = cand
                break
        # If no multiple-of-8 divisor fits, keep the largest multiple of 8 and
        # let Pallas pad/mask the tail edge block.
    n_cs = pl.cdiv(C, tc)

    vmem_est = tc * row_bytes + fixed_bytes
    # Clamp the scoped limit below physical VMEM (<= ~56 MiB on v7x).
    vmem_limit = int(min(max(vmem_est, 32 << 20), vmem_cap - (8 << 20)))

    # --- kernel 2: fm outer product, lane-dense (c2 on sublanes, t on lanes) -
    # NOTE: when W is not 128-aligned, padding W (and having the consumer accept
    # the padded layout) would make every store an unmasked full-lane vst.
    fm_n = pl.pallas_call(
        _cwa_fm_kernel,
        grid=(B, n_cs),
        in_specs=[
            pl.BlockSpec((1, tc, W), lambda b, cs: (b, cs, 0)),   # x chunk
            pl.BlockSpec((1, C, 1), lambda b, cs: (b, 0, 0)),     # v (per batch)
        ],
        out_specs=pl.BlockSpec((1, tc, C, W), lambda b, cs: (b, cs, 0, 0)),
        out_shape=jax.ShapeDtypeStruct((B, C, C, W), fm_dtype),
        compiler_params=pltpu.CompilerParams(
            # v is precomputed, so every (b, cs) step is independent: both grid
            # axes parallel -> v7x megacore sharding even when B == 1.
            dimension_semantics=("parallel", "parallel"),
            vmem_limit_bytes=vmem_limit),
    )(xc, v3)

    v = v3[:, :, 0]                            # (B, C); tiny reshape
    return v, fm_n


def torch_reference(x, fc1_w, fc1_b, fc2_w, fc2_b):
    """Pure-JAX mirror of the PyTorch forward (torch output layout), for tests."""
    B, C, H, W = x.shape
    x_perm = jnp.transpose(x, (0, 1, 3, 2))                # (B, C, W, H)
    fmap = jnp.mean(x, axis=3, keepdims=True)              # AvgPool2d((1, W))
    fmap = jnp.transpose(fmap, (0, 2, 3, 1))               # (B, H, 1, C)
    h = jnp.tanh(fmap @ fc1_w.T + fc1_b)                   # Linear(C, r) + Tanh
    s = h @ fc2_w.T + fc2_b                                # Linear(r, C)
    v = jax.nn.softmax(s, axis=3)
    v2 = v.reshape(-1, C)
    vr = jnp.tile(v2, (1, H * W)).reshape(-1, H, W, C)
    fm = x_perm * vr                                       # (B, C, W, C)
    return v2, fm


if __name__ == "__main__":
    B, C, H, W, R = 2, 4, 1, 16, 2   # small ACRNN-style shapes

    key = jax.random.PRNGKey(0)
    kx, k1, k2, k3, k4 = jax.random.split(key, 5)
    x = jax.random.normal(kx, (B, C, H, W), dtype=jnp.float32)

    # Deterministic parameter init (PyTorch-Linear-style uniform bounds)
    lim1 = 1.0 / (C ** 0.5)
    lim2 = 1.0 / (R ** 0.5)
    fc1_w = jax.random.uniform(k1, (R, C), jnp.float32, -lim1, lim1)
    fc1_b = jax.random.uniform(k2, (R,), jnp.float32, -lim1, lim1)
    fc2_w = jax.random.uniform(k3, (C, R), jnp.float32, -lim2, lim2)
    fc2_b = jax.random.uniform(k4, (C,), jnp.float32, -lim2, lim2)

    v, fm_n = channel_wise_attention_forward(x, fc1_w, fc1_b, fc2_w, fc2_b)
    v = jax.block_until_ready(v)
    fm_n = jax.block_until_ready(fm_n)

    v_exp, fm_exp = torch_reference(x, fc1_w, fc1_b, fc2_w, fc2_b)
    fm_exp_n = jnp.swapaxes(fm_exp, 2, 3)      # reference -> kernel-native layout (test-side only)
    assert v.shape == (B, C) and fm_n.shape == (B, C, C, W)
    assert jnp.allclose(v, v_exp, atol=1e-5, rtol=1e-4)
    assert jnp.allclose(fm_n, fm_exp_n, atol=1e-5, rtol=1e-4)

    # bf16 fm output path (halves the dominant HBM write bytes); looser tolerance.
    _, fm_bf16 = channel_wise_attention_forward(
        x, fc1_w, fc1_b, fc2_w, fc2_b, fm_dtype=jnp.bfloat16)
    fm_bf16 = jax.block_until_ready(fm_bf16)
    assert fm_bf16.dtype == jnp.bfloat16
    assert jnp.allclose(fm_bf16.astype(jnp.float32), fm_exp_n, atol=2e-2, rtol=2e-2)

    print("KERNEL_OK")
</pallas_src>

<mosaic_0001>
module attributes {stable_mosaic.version = 11 : i64} {
  func.func @_cwa_v_kernel(%arg0: i32, %arg1: memref<1x4x16xf32, #tpu.memory_space<vmem>>, %arg2: memref<4x2xf32, #tpu.memory_space<vmem>>, %arg3: memref<1x2xf32, #tpu.memory_space<vmem>>, %arg4: memref<4x2xf32, #tpu.memory_space<vmem>>, %arg5: memref<4x1xf32, #tpu.memory_space<vmem>>, %arg6: memref<1x4x1xf32, #tpu.memory_space<vmem>>) attributes {dimension_semantics = [#tpu.dimension_semantics<parallel>], iteration_bounds = array<i64: 2>, scalar_prefetch = 0 : i64, scratch_operands = 0 : i64, tpu.core_type = #tpu.core_type<tc>, window_params = [{transform_indices = @transform_0, window_bounds = array<i64: 1, 4, 16>}, {pipeline_mode = #tpu.pipeline_mode<synchronous>, transform_indices = @transform_1, window_bounds = array<i64: 4, 2>}, {pipeline_mode = #tpu.pipeline_mode<synchronous>, transform_indices = @transform_2, window_bounds = array<i64: 1, 2>}, {pipeline_mode = #tpu.pipeline_mode<synchronous>, transform_indices = @transform_3, window_bounds = array<i64: 4, 2>}, {pipeline_mode = #tpu.pipeline_mode<synchronous>, transform_indices = @transform_4, window_bounds = array<i64: 4, 1>}, {transform_indices = @transform_5, window_bounds = array<i64: 1, 4, 1>}]} {
    %c0 = arith.constant 0 : index
    %c0_0 = arith.constant 0 : index
    %c0_1 = arith.constant 0 : index
    %0 = vector.load %arg1[%c0, %c0_0, %c0_1] : memref<1x4x16xf32, #tpu.memory_space<vmem>>, vector<1x4x16xf32>
    %1 = vector.shape_cast %0 : vector<1x4x16xf32> to vector<4x16xf32>
    %cst = arith.constant dense<0.000000e+00> : vector<4xf32>
    %2 = vector.multi_reduction <add>, %1, %cst [1] : vector<4x16xf32> to vector<4xf32>
    %3 = vector.shape_cast %2 : vector<4xf32> to vector<4x1xf32>
    %cst_2 = arith.constant 1.600000e+01 : f32
    %4 = vector.broadcast %cst_2 : f32 to vector<4x1xf32>
    %5 = arith.divf %3, %4 : vector<4x1xf32>
    %c0_3 = arith.constant 0 : index
    %c0_4 = arith.constant 0 : index
    %6 = vector.load %arg2[%c0_3, %c0_4] : memref<4x2xf32, #tpu.memory_space<vmem>>, vector<4x2xf32>
    %7 = vector.broadcast %5 : vector<4x1xf32> to vector<4x2xf32>
    %8 = arith.mulf %6, %7 : vector<4x2xf32>
    %cst_5 = arith.constant dense<0.000000e+00> : vector<2xf32>
    %9 = vector.multi_reduction <add>, %8, %cst_5 [0] : vector<4x2xf32> to vector<2xf32>
    %10 = vector.shape_cast %9 : vector<2xf32> to vector<1x2xf32>
    %c0_6 = arith.constant 0 : index
    %c0_7 = arith.constant 0 : index
    %11 = vector.load %arg3[%c0_6, %c0_7] : memref<1x2xf32, #tpu.memory_space<vmem>>, vector<1x2xf32>
    %12 = arith.addf %10, %11 : vector<1x2xf32>
    %13 = math.tanh %12 : vector<1x2xf32>
    %c0_8 = arith.constant 0 : index
    %c0_9 = arith.constant 0 : index
    %14 = vector.load %arg4[%c0_8, %c0_9] : memref<4x2xf32, #tpu.memory_space<vmem>>, vector<4x2xf32>
    %15 = vector.broadcast %13 : vector<1x2xf32> to vector<4x2xf32>
    %16 = arith.mulf %14, %15 : vector<4x2xf32>
    %cst_10 = arith.constant dense<0.000000e+00> : vector<4xf32>
    %17 = vector.multi_reduction <add>, %16, %cst_10 [1] : vector<4x2xf32> to vector<4xf32>
    %18 = vector.shape_cast %17 : vector<4xf32> to vector<4x1xf32>
    %c0_11 = arith.constant 0 : index
    %c0_12 = arith.constant 0 : index
    %19 = vector.load %arg5[%c0_11, %c0_12] : memref<4x1xf32, #tpu.memory_space<vmem>>, vector<4x1xf32>
    %20 = arith.addf %18, %19 : vector<4x1xf32>
    %cst_13 = arith.constant dense<0xFF800000> : vector<1xf32>
    %21 = vector.multi_reduction <maximumf>, %20, %cst_13 [0] : vector<4x1xf32> to vector<1xf32>
    %22 = vector.shape_cast %21 : vector<1xf32> to vector<1x1xf32>
    %23 = vector.broadcast %22 : vector<1x1xf32> to vector<4x1xf32>
    %24 = arith.subf %20, %23 : vector<4x1xf32>
    %25 = math.exp %24 : vector<4x1xf32>
    %cst_14 = arith.constant dense<0.000000e+00> : vector<1xf32>
    %26 = vector.multi_reduction <add>, %25, %cst_14 [0] : vector<4x1xf32> to vector<1xf32>
    %27 = vector.shape_cast %26 : vector<1xf32> to vector<1x1xf32>
    %28 = vector.broadcast %27 : vector<1x1xf32> to vector<4x1xf32>
    %29 = arith.divf %25, %28 : vector<4x1xf32>
    %c0_15 = arith.constant 0 : index
    %c0_16 = arith.constant 0 : index
    %c0_17 = arith.constant 0 : index
    %30 = vector.load %arg6[%c0_15, %c0_16, %c0_17] : memref<1x4x1xf32, #tpu.memory_space<vmem>>, vector<1x4x1xf32>
    %31 = vector.shape_cast %30 : vector<1x4x1xf32> to vector<4x1xf32>
    %32 = vector.shape_cast %29 : vector<4x1xf32> to vector<1x4x1xf32>
    tpu.vector_store %arg6[%c0_15, %c0_16, %c0_17], %32 {strides = array<i32>} : memref<1x4x1xf32, #tpu.memory_space<vmem>>, vector<1x4x1xf32>,
    return
  }
  func.func @transform_0(%arg0: i32) -> (i32, i32, i32) {
    %c0_i32 = arith.constant 0 : i32
    %c0_i32_0 = arith.constant 0 : i32
    %c0_i32_1 = arith.constant 0 : i32
    return %arg0, %c0_i32, %c0_i32_0 : i32, i32, i32
  }
  func.func @transform_1(%arg0: i32) -> (i32, i32) {
    %c0_i32 = arith.constant 0 : i32
    %c0_i32_0 = arith.constant 0 : i32
    %c0_i32_1 = arith.constant 0 : i32
    return %c0_i32, %c0_i32_0 : i32, i32
  }
  func.func @transform_2(%arg0: i32) -> (i32, i32) {
    %c0_i32 = arith.constant 0 : i32
    %c0_i32_0 = arith.constant 0 : i32
    %c0_i32_1 = arith.constant 0 : i32
    return %c0_i32, %c0_i32_0 : i32, i32
  }
  func.func @transform_3(%arg0: i32) -> (i32, i32) {
    %c0_i32 = arith.constant 0 : i32
    %c0_i32_0 = arith.constant 0 : i32
    %c0_i32_1 = arith.constant 0 : i32
    return %c0_i32, %c0_i32_0 : i32, i32
  }
  func.func @transform_4(%arg0: i32) -> (i32, i32) {
    %c0_i32 = arith.constant 0 : i32
    %c0_i32_0 = arith.constant 0 : i32
    %c0_i32_1 = arith.constant 0 : i32
    return %c0_i32, %c0_i32_0 : i32, i32
  }
  func.func @transform_5(%arg0: i32) -> (i32, i32, i32) {
    %c0_i32 = arith.constant 0 : i32
    %c0_i32_0 = arith.constant 0 : i32
    %c0_i32_1 = arith.constant 0 : i32
    return %arg0, %c0_i32, %c0_i32_0 : i32, i32, i32
  }
}

</mosaic_0001>

<llo_original>
// kernel: tpu_custom_call.1
$region0: #{tpu_custom_call.1}
  #allocation0 [shape = 'u32[]', space=smem, size = 0x4, offset = 0x4, fixed_abs, tag = 'smem constant byte address 0x4 - core index']
  #allocation1 [shape = 'u32[144,128]{1,0:T(1,128)}', space=vmem, size = 0x12000, scoped, tag = 'internal scratch']
  %s0 = inlined_call_operand.vmem [shape: f32[2,4,16], index: 0, kind: input, shape index: {}]
  %s1 = inlined_call_operand.vmem [shape: f32[4,2], index: 1, kind: input, shape index: {}]
  %s2 = inlined_call_operand.vmem [shape: f32[1,2], index: 2, kind: input, shape index: {}]
  %s3 = inlined_call_operand.vmem [shape: f32[4,2], index: 3, kind: input, shape index: {}]
  %s4 = inlined_call_operand.vmem [shape: f32[4,1], index: 4, kind: input, shape index: {}]
  %s5 = inlined_call_operand.vmem [shape: f32[2,4,1], index: 5, kind: output, shape index: {}]
  %s6 = sld [smem:[#allocation0]]
  $region53: #{tpu_custom_call.1} parent=0
    _
  %s8 = ssub.s32 1, %s6
  %s9 = scalar_select 0, %s8, %s6
  loop: start=0, step=1, limit=4
  $region2: #{tpu_custom_call.1} parent=0 // loop_pre_header
    _
  $region3: #{tpu_custom_call.1} parent=0 // loop_header
    %s11 = sphi 0, %s15
    %p12 = scmp.ge.s32.totalorder %s11, 4
    %s21 = sphi 0, %s23
    %s24 = sphi 0, %s21
    %s25 = sphi 0, %s24
    %s41 = sphi 0, %s25
    %s45 = sphi 0, %s45
    %s47 = sphi 0, %s45
    %s48 = sphi 0, %s47
    %s62 = sphi 0, %s48
    %s66 = sphi 0, %s66
    %s68 = sphi 0, %s66
    %s69 = sphi 0, %s68
    %s83 = sphi 0, %s69
    %s87 = sphi 0, %s87
    %s89 = sphi 0, %s87
    %s90 = sphi 0, %s89
    %s104 = sphi 0, %s90
    %s108 = sphi 0, %s108
    %s110 = sphi 0, %s108
    %s111 = sphi 0, %s110
    %s125 = sphi 0, %s111
    %s131 = sphi 0, %s133
    %s134 = sphi 0, %s131
    %s135 = sphi 0, %s134
    %s151 = sphi 0, %s135
  $region4: #{tpu_custom_call.1} parent=0 // loop_header_branch
    %14 = sbr.rel (%p12) target = $region8
  $region5: #{tpu_custom_call.1} parent=0 // loop_body
    %s16 = ssub.s32 %s11, 1
    %s17 = ssub.s32 %s11, 2
    %s18 = sadd.s32 %s11, 1
    %s19 = ssub.s32 %s11, %s18
    %p20 = scmp.eq.s32.totalorder %s19, 0
    %s22 = sadd.s32 %s21, 1
    %s23 = scalar_select %p20, %s21, %s22
    %p26 = pneg %p20
    %p27 = scmp.eq.s32.totalorder %s11, 1
    %p28 = por %p26, %p27
    %p29 = scmp.ne.s32.totalorder %s21, %s24
    %p30 = scmp.eq.s32.totalorder %s11, 0
    %p31 = por %p29, %p30
    %p32 = scmp.ne.s32.totalorder %s21, %s24
    %p33 = scmp.eq.s32.totalorder %s16, 1
    %p34 = por %p32, %p33
    %p35 = scmp.ne.s32.totalorder %s24, %s25
    %p36 = scmp.eq.s32.totalorder %s16, 0
    %p37 = por %p35, %p36
    %p38 = scmp.ne.s32.totalorder %s24, %s25
    %p39 = scmp.eq.s32.totalorder %s17, 1
    %p40 = por %p38, %p39
    %p42 = scmp.ne.s32.totalorder %s25, %s41
    %p43 = scmp.eq.s32.totalorder %s17, 0
    %p44 = por %p42, %p43
    %s46 = sadd.s32 %s45, 1
    %p49 = scmp.eq.s32.totalorder %s11, 1
    %p50 = scmp.ne.s32.totalorder %s45, %s47
    %p51 = scmp.eq.s32.totalorder %s11, 0
    %p52 = por %p50, %p51
    %p53 = scmp.ne.s32.totalorder %s45, %s47
    %p54 = scmp.eq.s32.totalorder %s16, 1
    %p55 = por %p53, %p54
    %p56 = scmp.ne.s32.totalorder %s47, %s48
    %p57 = scmp.eq.s32.totalorder %s16, 0
    %p58 = por %p56, %p57
    %p59 = scmp.ne.s32.totalorder %s47, %s48
    %p60 = scmp.eq.s32.totalorder %s17, 1
    %p61 = por %p59, %p60
    %p63 = scmp.ne.s32.totalorder %s48, %s62
    %p64 = scmp.eq.s32.totalorder %s17, 0
    %p65 = por %p63, %p64
    %s67 = sadd.s32 %s66, 1
    %p70 = scmp.eq.s32.totalorder %s11, 1
    %p71 = scmp.ne.s32.totalorder %s66, %s68
    %p72 = scmp.eq.s32.totalorder %s11, 0
    %p73 = por %p71, %p72
    %p74 = scmp.ne.s32.totalorder %s66, %s68
    %p75 = scmp.eq.s32.totalorder %s16, 1
    %p76 = por %p74, %p75
    %p77 = scmp.ne.s32.totalorder %s68, %s69
    %p78 = scmp.eq.s32.totalorder %s16, 0
    %p79 = por %p77, %p78
    %p80 = scmp.ne.s32.totalorder %s68, %s69
    %p81 = scmp.eq.s32.totalorder %s17, 1
    %p82 = por %p80, %p81
    %p84 = scmp.ne.s32.totalorder %s69, %s83
    %p85 = scmp.eq.s32.totalorder %s17, 0
    %p86 = por %p84, %p85
    %s88 = sadd.s32 %s87, 1
    %p91 = scmp.eq.s32.totalorder %s11, 1
    %p92 = scmp.ne.s32.totalorder %s87, %s89
    %p93 = scmp.eq.s32.totalorder %s11, 0
    %p94 = por %p92, %p93
    %p95 = scmp.ne.s32.totalorder %s87, %s89
    %p96 = scmp.eq.s32.totalorder %s16, 1
    %p97 = por %p95, %p96
    %p98 = scmp.ne.s32.totalorder %s89, %s90
    %p99 = scmp.eq.s32.totalorder %s16, 0
    %p100 = por %p98, %p99
    %p101 = scmp.ne.s32.totalorder %s89, %s90
    %p102 = scmp.eq.s32.totalorder %s17, 1
    %p103 = por %p101, %p102
    %p105 = scmp.ne.s32.totalorder %s90, %s104
    %p106 = scmp.eq.s32.totalorder %s17, 0
    %p107 = por %p105, %p106
    %s109 = sadd.s32 %s108, 1
    %p112 = scmp.eq.s32.totalorder %s11, 1
    %p113 = scmp.ne.s32.totalorder %s108, %s110
    %p114 = scmp.eq.s32.totalorder %s11, 0
    %p115 = por %p113, %p114
    %p116 = scmp.ne.s32.totalorder %s108, %s110
    %p117 = scmp.eq.s32.totalorder %s16, 1
    %p118 = por %p116, %p117
    %p119 = scmp.ne.s32.totalorder %s110, %s111
    %p120 = scmp.eq.s32.totalorder %s16, 0
    %p121 = por %p119, %p120
    %p122 = scmp.ne.s32.totalorder %s110, %s111
    %p123 = scmp.eq.s32.totalorder %s17, 1
    %p124 = por %p122, %p123
    %p126 = scmp.ne.s32.totalorder %s111, %s125
    %p127 = scmp.eq.s32.totalorder %s17, 0
    %p128 = por %p126, %p127
    %s129 = ssub.s32 %s11, %s18
    %p130 = scmp.eq.s32.totalorder %s129, 0
    %s132 = sadd.s32 %s131, 1
    %s133 = scalar_select %p130, %s131, %s132
    %p136 = pneg %p130
    %p137 = scmp.eq.s32.totalorder %s11, 1
    %p138 = por %p136, %p137
    %p139 = scmp.ne.s32.totalorder %s131, %s134
    %p140 = scmp.eq.s32.totalorder %s11, 0
    %p141 = por %p139, %p140
    %p142 = scmp.ne.s32.totalorder %s131, %s134
    %p143 = scmp.eq.s32.totalorder %s16, 1
    %p144 = por %p142, %p143
    %p145 = scmp.ne.s32.totalorder %s134, %s135
    %p146 = scmp.eq.s32.totalorder %s16, 0
    %p147 = por %p145, %p146
    %p148 = scmp.ne.s32.totalorder %s134, %s135
    %p149 = scmp.eq.s32.totalorder %s17, 1
    %p150 = por %p148, %p149
    %p152 = scmp.ne.s32.totalorder %s135, %s151
    %p153 = scmp.eq.s32.totalorder %s17, 0
    %p154 = por %p152, %p153
    %p155 = scmp.le.s32.totalorder 1, %s11
    %p156 = scmp.lt.s32.totalorder %s11, 3
    %p157 = pnand %p155, %p156
    %p158 = pneg %p157
    // Predicated region
    $region9: #{tpu_custom_call.1} parent=5 // pred_check
      _
    $region10: #{tpu_custom_call.1} parent=5 // pred_check_branch
      %160 = sbr.rel (%p157) target = $region12
    $region11: #{tpu_custom_call.1} parent=5 // pred_region
      %s161 = ssub.s32 %s11, 1
      // Predicated region
      $region13: #{tpu_custom_call.1} parent=11 // pred_check
        %p162 = pneg %p58
      $region14: #{tpu_custom_call.1} parent=11 // pred_check_branch
        %164 = sbr.rel (%p162) target = $region16
      $region15: #{tpu_custom_call.1} parent=11 // pred_region
        _
      $region16: #{tpu_custom_call.1} parent=11 // pred_fallthru
        _
      // Predicated region
      $region17: #{tpu_custom_call.1} parent=11 // pred_check
        %p165 = pneg %p79
      $region18: #{tpu_custom_call.1} parent=11 // pred_check_branch
        %167 = sbr.rel (%p165) target = $region20
      $region19: #{tpu_custom_call.1} parent=11 // pred_region
        _
      $region20: #{tpu_custom_call.1} parent=11 // pred_fallthru
        _
      // Predicated region
      $region21: #{tpu_custom_call.1} parent=11 // pred_check
        %p168 = pneg %p100
      $region22: #{tpu_custom_call.1} parent=11 // pred_check_branch
        %170 = sbr.rel (%p168) target = $region24
      $region23: #{tpu_custom_call.1} parent=11 // pred_region
        _
      $region24: #{tpu_custom_call.1} parent=11 // pred_fallthru
        _
      // Predicated region
      $region25: #{tpu_custom_call.1} parent=11 // pred_check
        %p171 = pneg %p121
      $region26: #{tpu_custom_call.1} parent=11 // pred_check_branch
        %173 = sbr.rel (%p171) target = $region28
      $region27: #{tpu_custom_call.1} parent=11 // pred_region
        _
      $region28: #{tpu_custom_call.1} parent=11 // pred_fallthru
        _
    $region12: #{tpu_custom_call.1} parent=5 // pred_fallthru
      _
    %p174 = scmp.lt.s32.totalorder %s11, 2
    // Predicated region
    $region29: #{tpu_custom_call.1} parent=5 // pred_check
      %p175 = pneg %p174
    $region30: #{tpu_custom_call.1} parent=5 // pred_check_branch
      %177 = sbr.rel (%p175) target = $region32
    $region31: #{tpu_custom_call.1} parent=5 // pred_region
      // Predicated region
      $region33: #{tpu_custom_call.1} parent=31 // pred_check
        %p178 = pneg %p31
      $region34: #{tpu_custom_call.1} parent=31 // pred_check_branch
        %180 = sbr.rel (%p178) target = $region36
      $region35: #{tpu_custom_call.1} parent=31 // pred_region
        %p181 = scmp.lt.s32.totalorder %s11, 1
        %s182 = scalar_select %p181, %s11, 1
        %s183 = smul.addr %s182, 4
        %s184 = scalar_lea.vmem %s0, %s183
      $region36: #{tpu_custom_call.1} parent=31 // pred_fallthru
        _
    $region32: #{tpu_custom_call.1} parent=5 // pred_fallthru
      _
    %p185 = scmp.le.s32.totalorder 1, %s11
    %p186 = scmp.lt.s32.totalorder %s11, 3
    %p187 = pnand %p185, %p186
    %p188 = pneg %p187
    // Predicated region
    $region37: #{tpu_custom_call.1} parent=5 // pred_check
      _
    $region38: #{tpu_custom_call.1} parent=5 // pred_check_branch
      %190 = sbr.rel (%p187) target = $region40
    $region39: #{tpu_custom_call.1} parent=5 // pred_region
      %s191 = ssub.s32 %s11, 1
      %p192 = scmp.lt.s32.totalorder %s16, 1
      %s193 = scalar_select %p192, %s16, 1
      %s194 = smul.addr %s193, 4
      %s195 = scalar_lea.vmem %s0, %s194
      %p196 = pneg %p37
      %p197 = pneg %p34
      %p198 = pneg %p58
      %p199 = pneg %p55
      %p200 = pneg %p79
      %p201 = pneg %p76
      %p202 = pneg %p100
      %p203 = pneg %p97
      %p204 = pneg %p121
      %p205 = pneg %p118
      %p206 = pneg %p147
      %p207 = pneg %p144
      %p208 = scmp.lt.s32.totalorder %s16, 1
      %s209 = scalar_select %p208, %s16, 1
      %s210 = smul.addr %s209, 4
      %s211 = scalar_lea.vmem %s5, %s210
      %p212 = scmp.lt.s32.totalorder %s16, 1
      %s213 = scalar_select %p212, %s16, 1
      %s214 = smul.addr %s213, 4
      %s215 = scalar_lea.vmem %s0, %s214
      %p216 = scmp.lt.s32.totalorder %s16, 1
      %s217 = scalar_select %p216, %s16, 1
      %s218 = smul.addr %s217, 4
      %s219 = scalar_lea.vmem %s5, %s218
      %v220 = vld [vmem:[%s215] sm:$0xf]
      %vm221 = vcmask 125952
      %v222 = vsel %vm221, %v220, 0.0
      %223 = vadd.xlane.f32.xlu0 %v222
      %v224 = vpop.xlane.xlu0 %223
      %v225 = vrcp.pop 16.0
      %v226 = vmul.f32 %v224, %v225
      %v227 = vld [vmem:[%s1] sm:$0xf]
      %v228 = vmul.f32 %v227, %v226
      %vm229 = vcmask 11264
      %v230 = vsel %vm229, %v228, 0.0
      %v231 = vrot.slane %v230, 4
      %v232 = vadd.f32 %v230, %v231
      %v233 = vrot.slane %v232, 2
      %v234 = vadd.f32 %v232, %v233
      %v235 = vrot.slane %v234, 1
      %v236 = vadd.f32 %v234, %v235
      %v237 = vld [vmem:[%s2] sm:$0x1]
      %v238 = vadd.f32 %v236, %v237
      %v239 = vtanh.pop %v238
      %v240 = vld [vmem:[%s3] sm:$0xf]
      %v241 = vlaneseq
      %v242 = vshrl.u32 %v241, 7
      %v243 = vsub.s32 0, %v242
      %v244 = vrot.slane %v239, %v243
      %v245 = vmul.f32 %v240, %v244
      %v246 = vsel %vm229, %v245, 0.0
      %247 = vadd.xlane.f32.xlu0 %v246
      %v248 = vpop.xlane.xlu0 %247
      %v249 = vld [vmem:[%s4] sm:$0xf]
      %v250 = vadd.f32 %v248, %v249
      %vm251 = vcmask 3072
      %v252 = vsel %vm251, %v250, -inf
      %v253 = vrot.slane %v252, 4
      %v254 = vmax.f32 %v252, %v253
      %v255 = vrot.slane %v254, 2
      %v256 = vmax.f32 %v254, %v255
      %v257 = vrot.slane %v256, 1
      %v258 = vmax.f32 %v256, %v257
      %v259 = vsub.f32 %v250, %v258
      %v260 = vmul.f32 %v259, 1.442695
      %v261 = vpow.pop %v260
      %v262 = vsel %vm251, %v261, 0.0
      %v263 = vrot.slane %v262, 4
      %v264 = vadd.f32 %v262, %v263
      %v265 = vrot.slane %v264, 2
      %v266 = vadd.f32 %v264, %v265
      %v267 = vrot.slane %v266, 1
      %v268 = vadd.f32 %v266, %v267
      %v269 = vrcp.pop %v268
      %v270 = vmul.f32 %v261, %v269
      %271 = vst.msk [vmem:[%s219] sm:$0xf] %vm251, %v270
      %p272 = scmp.lt.s32.totalorder %s16, 1
      %s273 = scalar_select %p272, %s16, 1
      %s274 = smul.addr %s273, 4
      %s275 = scalar_lea.vmem %s5, %s274
      // Predicated region
      $region41: #{tpu_custom_call.1} parent=39 // pred_check
        %p276 = pneg %p144
      $region42: #{tpu_custom_call.1} parent=39 // pred_check_branch
        %278 = sbr.rel (%p276) target = $region44
      $region43: #{tpu_custom_call.1} parent=39 // pred_region
        _
      $region44: #{tpu_custom_call.1} parent=39 // pred_fallthru
        _
    $region40: #{tpu_custom_call.1} parent=5 // pred_fallthru
      _
    %p279 = scmp.le.s32.totalorder 2, %s11
    // Predicated region
    $region45: #{tpu_custom_call.1} parent=5 // pred_check
      %p280 = pneg %p279
    $region46: #{tpu_custom_call.1} parent=5 // pred_check_branch
      %282 = sbr.rel (%p280) target = $region48
    $region47: #{tpu_custom_call.1} parent=5 // pred_region
      %s283 = ssub.s32 %s11, 2
      // Predicated region
      $region49: #{tpu_custom_call.1} parent=47 // pred_check
        %p284 = pneg %p150
      $region50: #{tpu_custom_call.1} parent=47 // pred_check_branch
        %286 = sbr.rel (%p284) target = $region52
      $region51: #{tpu_custom_call.1} parent=47 // pred_region
        %p287 = scmp.lt.s32.totalorder %s17, 1
        %s288 = scalar_select %p287, %s17, 1
        %s289 = smul.addr %s288, 4
        %s290 = scalar_lea.vmem %s5, %s289
      $region52: #{tpu_custom_call.1} parent=47 // pred_fallthru
        _
    $region48: #{tpu_custom_call.1} parent=5 // pred_fallthru
      _
  $region6: #{tpu_custom_call.1} parent=0 // loop_footer
    %s15 = sadd.s32 1, %s11
  $region7: #{tpu_custom_call.1} parent=0 // loop_footer_branch
    %10 = sbr.rel target = $region3
  $region8: #{tpu_custom_call.1} parent=0 // loop_exit
    _

</llo_original>
